<compile_context>
chip_gen: v7x
topology: tpu7x:2x2x1
jax: 0.10.0
libtpu: 0.0.40
codegen_flags: <defaults>
</compile_context>

<pallas_src>
import functools

import jax
import jax.numpy as jnp
from jax.experimental import pallas as pl
from jax.experimental.pallas import tpu as pltpu


# ------------------------------ helpers ------------------------------------ #

def _fit(dim, target):
    """Largest tile <= target that evenly divides dim (whole dim if already small)."""
    if dim <= target:
        return dim
    for t in range(target, 0, -1):
        if dim % t == 0:
            return t
    return dim


# --------------------------- dense (matmul) kernel -------------------------- #

def _dense_kernel(x_ref, w_ref, b_ref, o_ref, acc_ref, *, activation):
    k = pl.program_id(2)

    @pl.when(k == 0)
    def _init():
        acc_ref[...] = jnp.zeros_like(acc_ref)

    # bf16 MXU matmul, f32 accumulation (weights stored bf16; activations cast in-reg).
    acc_ref[...] += jnp.dot(
        x_ref[...].astype(jnp.bfloat16),
        w_ref[...].astype(jnp.bfloat16),
        preferred_element_type=jnp.float32,
    )

    @pl.when(k == pl.num_programs(2) - 1)
    def _finalize():
        out = acc_ref[...] + b_ref[...].astype(jnp.float32)
        if activation == "gelu":
            # TODO(synk): HF RoFormer uses exact (erf) GELU; Mosaic does not reliably
            # lower lax.erf, so the tanh approximation is used here.
            out = jax.nn.gelu(out, approximate=True)
        o_ref[...] = out.astype(o_ref.dtype)


def dense(x, w, b, activation=None, out_dtype=jnp.float32,
          tm_target=256, tn_target=256, tk_target=512):
    """x: (M, K) @ w: (K, N) + b: (N,) -> (M, N), tiled for MXU / 2-TC megacore.

    Tile targets are multiples of 256 on M/N (v6e/v7x MXU) and keep the working set
    (2 inputs x 2 buffers + f32 accumulator) at a few MiB, well under v7x's 64 MiB VMEM.
    """
    M, K = x.shape
    Kw, N = w.shape
    assert K == Kw
    tm, tn, tk = _fit(M, tm_target), _fit(N, tn_target), _fit(K, tk_target)
    grid = (M // tm, N // tn, K // tk)
    return pl.pallas_call(
        functools.partial(_dense_kernel, activation=activation),
        out_shape=jax.ShapeDtypeStruct((M, N), out_dtype),
        grid=grid,
        in_specs=[
            pl.BlockSpec((tm, tk), lambda i, j, k: (i, k)),
            pl.BlockSpec((tk, tn), lambda i, j, k: (k, j)),
            pl.BlockSpec((1, tn), lambda i, j, k: (0, j)),
        ],
        out_specs=pl.BlockSpec((tm, tn), lambda i, j, k: (i, j)),
        scratch_shapes=[pltpu.VMEM((tm, tn), jnp.float32)],
        compiler_params=pltpu.CompilerParams(
            dimension_semantics=("parallel", "parallel", "arbitrary")),
    )(x, w, b.reshape(1, N))


# --------------------- LayerNorm with fused residual add -------------------- #

def _layernorm_add_kernel(a_ref, b_ref, g_ref, beta_ref, o_ref, *, eps):
    x = a_ref[...].astype(jnp.float32) + b_ref[...].astype(jnp.float32)
    mu = jnp.mean(x, axis=-1, keepdims=True)
    var = jnp.mean((x - mu) ** 2, axis=-1, keepdims=True)
    y = (x - mu) * jax.lax.rsqrt(var + eps)
    o_ref[...] = (y * g_ref[...] + beta_ref[...]).astype(o_ref.dtype)


def layernorm_add(a, b, gamma, beta, eps=1e-12, tm_target=256):
    """LayerNorm(a + b): residual add fused in-kernel, tiled over rows."""
    M, H = a.shape
    tm = _fit(M, tm_target)
    return pl.pallas_call(
        functools.partial(_layernorm_add_kernel, eps=eps),
        out_shape=jax.ShapeDtypeStruct((M, H), jnp.float32),
        grid=(M // tm,),
        in_specs=[
            pl.BlockSpec((tm, H), lambda i: (i, 0)),
            pl.BlockSpec((tm, H), lambda i: (i, 0)),
            pl.BlockSpec((1, H), lambda i: (0, 0)),
            pl.BlockSpec((1, H), lambda i: (0, 0)),
        ],
        out_specs=pl.BlockSpec((tm, H), lambda i: (i, 0)),
        compiler_params=pltpu.CompilerParams(dimension_semantics=("parallel",)),
    )(a, b, gamma.reshape(1, H), beta.reshape(1, H))


# ------------------------------ attention kernel ---------------------------- #

def _attention_kernel(q_ref, k_ref, v_ref, m_ref, sin_ref, cos_ref, o_ref,
                      *, heads, scale):
    S, HGD = q_ref.shape
    Dh = HGD // heads
    sin = sin_ref[...]                     # (S, HGD) f32, tiled per head
    cos = cos_ref[...]
    m = m_ref[...]                         # (1, S) additive key mask (-1e9 on padding)

    lane = jax.lax.broadcasted_iota(jnp.int32, (S, HGD), 1)
    even = (lane % 2) == 0

    def rope(x):
        # RoFormer interleaved rotate: rot[:, 2i] = -x[:, 2i+1]; rot[:, 2i+1] = x[:, 2i].
        # pltpu.roll follows jnp.roll convention: roll(x, s)[j] = x[j - s].
        nxt = pltpu.roll(x, shift=HGD - 1, axis=1)   # x[:, j+1] (cyclic; unused at pair end)
        prv = pltpu.roll(x, shift=1, axis=1)         # x[:, j-1] (cyclic; unused at pair start)
        rot = jnp.where(even, -nxt, prv)
        return x * cos + rot * sin

    q = (rope(q_ref[...].astype(jnp.float32)) * scale).astype(jnp.bfloat16)
    k = rope(k_ref[...].astype(jnp.float32)).astype(jnp.bfloat16)
    v = v_ref[...]

    # TODO(synk): for long S convert to flash-style online softmax over KV tiles
    # (full (S,S) scores kept here since S is small).
    for h in range(heads):
        sl = slice(h * Dh, (h + 1) * Dh)
        qh, kh, vh = q[:, sl], k[:, sl], v[:, sl]
        # Q @ K^T without materializing a transpose of K (NT dot_general).
        s = jax.lax.dot_general(qh, kh, (((1,), (1,)), ((), ())),
                                preferred_element_type=jnp.float32)
        s = s + m
        # NOTE: rows that are entirely padding end up with a uniform softmax (the -1e9
        # cancels after max-subtraction); harmless since only the CLS row is pooled.
        s = s - jnp.max(s, axis=-1, keepdims=True)
        p = jnp.exp(s)
        p = p * pl.reciprocal(jnp.sum(p, axis=-1, keepdims=True), approx=True)
        ctx = jax.lax.dot_general(p.astype(jnp.bfloat16), vh,
                                  (((1,), (0,)), ((), ())),
                                  preferred_element_type=jnp.float32)
        o_ref[:, sl] = ctx.astype(o_ref.dtype)


def attention(qkv, mask_add, sin_t, cos_t, B, S, H, nH, scale):
    """qkv: (B*S, 3H) fused projection (bf16); mask_add: (B, 1, S); sin/cos: (S, H).

    Grid = (batch, head-group); each step reads/writes a lane-dense (S, HGD) column
    slice (HGD = 128 when possible, else H) so attention never round-trips transposed
    (B,nH,S,Dh) tensors through HBM.
    """
    Dh = H // nH
    if H % 128 == 0 and 128 % Dh == 0:
        HGD = 128                     # pack heads to a full 128-lane block
    else:
        HGD = H                       # small models: all heads at once
    HG = HGD // Dh
    NG = H // HGD

    qkv3 = qkv.reshape(B, S, 3 * H)
    if HGD % 128 == 0:
        # Window q/k/v directly out of the fused QKV buffer (no split copies).
        srcs = (qkv3, qkv3, qkv3)
        offs = (0, NG, 2 * NG)
    else:
        srcs = (qkv3[:, :, :H], qkv3[:, :, H:2 * H], qkv3[:, :, 2 * H:])
        offs = (0, 0, 0)

    def qkv_spec(off):
        return pl.BlockSpec((None, S, HGD), lambda b, g, off=off: (b, 0, off + g))

    return pl.pallas_call(
        functools.partial(_attention_kernel, heads=HG, scale=scale),
        out_shape=jax.ShapeDtypeStruct((B, S, H), jnp.bfloat16),
        grid=(B, NG),
        in_specs=[
            qkv_spec(offs[0]), qkv_spec(offs[1]), qkv_spec(offs[2]),
            pl.BlockSpec((None, 1, S), lambda b, g: (b, 0, 0)),
            pl.BlockSpec((S, HGD), lambda b, g: (0, g)),
            pl.BlockSpec((S, HGD), lambda b, g: (0, g)),
        ],
        out_specs=pl.BlockSpec((None, S, HGD), lambda b, g: (b, 0, g)),
        compiler_params=pltpu.CompilerParams(
            dimension_semantics=("parallel", "parallel")),
    )(srcs[0], srcs[1], srcs[2], mask_add, sin_t, cos_t)


# ------------------------------ L2 normalize -------------------------------- #

def _l2norm_kernel(x_ref, o_ref, *, eps):
    x = x_ref[...].astype(jnp.float32)
    ss = jnp.sum(x * x, axis=-1, keepdims=True)
    # x / max(||x||, eps) == x * rsqrt(max(||x||^2, eps^2))
    o_ref[...] = (x * jax.lax.rsqrt(jnp.maximum(ss, eps * eps))).astype(o_ref.dtype)


def l2_normalize(x, eps=1e-12):
    """F.normalize(x, p=2.0, dim=1) for x: (B, H) — tiny tensor, whole-array kernel."""
    vmem = pl.BlockSpec(memory_space=pltpu.MemorySpace.VMEM)
    return pl.pallas_call(
        functools.partial(_l2norm_kernel, eps=eps),
        out_shape=jax.ShapeDtypeStruct(x.shape, jnp.float32),
        in_specs=[vmem],
        out_specs=vmem,
    )(x)


# ------------------------------ JAX glue ------------------------------------ #

def rotary_tables(seq_len, dim):
    """RoFormer sinusoidal tables, repeat-interleaved to full head dim (S, dim)."""
    inv_freq = 1.0 / (10000.0 ** (jnp.arange(0, dim, 2, dtype=jnp.float32) / dim))
    pos = jnp.arange(seq_len, dtype=jnp.float32)
    freqs = pos[:, None] * inv_freq[None, :]          # (S, dim/2)
    sin = jnp.repeat(jnp.sin(freqs), 2, axis=-1)      # (S, dim)
    cos = jnp.repeat(jnp.cos(freqs), 2, axis=-1)
    return sin, cos


def encode(params, input_ids, token_type_ids, attention_mask, cfg):
    """RoFormer encoder -> last hidden state (B, S, H)."""
    B, S = input_ids.shape
    H, nH = cfg["hidden"], cfg["heads"]
    Dh = H // nH
    M = B * S

    we = params["word_emb"][input_ids].reshape(M, H)
    te = params["type_emb"][token_type_ids].reshape(M, H)
    h = layernorm_add(we, te, params["emb_ln_g"], params["emb_ln_b"])        # (M, H) f32

    mask_add = ((1.0 - attention_mask.astype(jnp.float32)) * -1e9).reshape(B, 1, S)
    sin_d, cos_d = rotary_tables(S, Dh)
    sin_t = jnp.tile(sin_d, (1, nH))                                         # (S, H)
    cos_t = jnp.tile(cos_d, (1, nH))
    scale = 1.0 / (Dh ** 0.5)

    for lp in params["layers"]:
        x = h
        # Fused QKV projection: one (H, 3H) matmul, bf16 output feeds attention.
        qkv = dense(x, lp["w_qkv"], lp["b_qkv"], out_dtype=jnp.bfloat16)     # (M, 3H)
        ctx = attention(qkv, mask_add, sin_t, cos_t, B, S, H, nH, scale)     # (B, S, H)
        attn_out = dense(ctx.reshape(M, H), lp["wo"], lp["bo"])              # (M, H) f32
        h = layernorm_add(x, attn_out, lp["ln1_g"], lp["ln1_b"])

        ff = dense(h, lp["w1"], lp["b1"], activation="gelu",
                   out_dtype=jnp.bfloat16)                                   # (M, I)
        ff = dense(ff, lp["w2"], lp["b2"])                                   # (M, H) f32
        h = layernorm_add(h, ff, lp["ln2_g"], lp["ln2_b"])

    return h.reshape(B, S, H)


def vector_model_forward(params, ipt, cfg):
    """Mirrors VectorModel.forward: CLS pooling + L2 normalize for query & doc."""
    out = {}
    q_hidden = encode(params, ipt["query_ipt"]["input_ids"],
                      ipt["query_ipt"]["token_type_ids"],
                      ipt["query_ipt"]["attention_mask"], cfg)
    out["query_vecs"] = l2_normalize(q_hidden[:, 0, :])
    d_hidden = encode(params, ipt["doc_ipt"]["input_ids"],
                      ipt["doc_ipt"]["token_type_ids"],
                      ipt["doc_ipt"]["attention_mask"], cfg)
    out["doc_vecs"] = l2_normalize(d_hidden[:, 0, :])
    return out


def init_params(key, cfg):
    H, I, V, T, L = (cfg["hidden"], cfg["intermediate"], cfg["vocab"],
                     cfg["types"], cfg["layers"])

    def nrm(k, shape, dtype=jnp.float32):
        return (0.02 * jax.random.normal(k, shape, dtype=jnp.float32)).astype(dtype)

    keys = iter(jax.random.split(key, 4 + L * 8))
    params = {
        "word_emb": nrm(next(keys), (V, H)),
        "type_emb": nrm(next(keys), (T, H)),
        "emb_ln_g": jnp.ones((H,), jnp.float32),
        "emb_ln_b": jnp.zeros((H,), jnp.float32),
        "layers": [],
    }
    bf16 = jnp.bfloat16
    for _ in range(L):
        lp = {
            # fused Q|K|V projection weight (H, 3H), weights stored bf16 for the MXU
            "w_qkv": nrm(next(keys), (H, 3 * H), bf16),
            "b_qkv": jnp.zeros((3 * H,), jnp.float32),
            "wo": nrm(next(keys), (H, H), bf16), "bo": jnp.zeros((H,), jnp.float32),
            "ln1_g": jnp.ones((H,), jnp.float32), "ln1_b": jnp.zeros((H,), jnp.float32),
            "w1": nrm(next(keys), (H, I), bf16), "b1": jnp.zeros((I,), jnp.float32),
            "w2": nrm(next(keys), (I, H), bf16), "b2": jnp.zeros((H,), jnp.float32),
            "ln2_g": jnp.ones((H,), jnp.float32), "ln2_b": jnp.zeros((H,), jnp.float32),
        }
        params["layers"].append(lp)
    return params


# TODO(synk): tokenizer / pretrained-checkpoint loading (RoFormer from_pretrained) has
# no Pallas equivalent; parameters are synthetically initialized instead.

if __name__ == "__main__":
    cfg = dict(vocab=100, types=2, hidden=32, heads=2, intermediate=64, layers=2)
    B, S = 2, 8

    root = jax.random.PRNGKey(0)
    k_params, k_q, k_d = jax.random.split(root, 3)
    params = init_params(k_params, cfg)

    def make_inputs(k):
        ids = jax.random.randint(k, (B, S), 0, cfg["vocab"], dtype=jnp.int32)
        tt = jnp.zeros((B, S), jnp.int32)
        # second example has 2 padding positions
        mask = jnp.array([[1] * S, [1] * (S - 2) + [0, 0]], jnp.int32)
        return {"input_ids": ids, "token_type_ids": tt, "attention_mask": mask}

    ipt = {"query_ipt": make_inputs(k_q), "doc_ipt": make_inputs(k_d)}

    out = vector_model_forward(params, ipt, cfg)
    jax.block_until_ready(out["query_vecs"])
    jax.block_until_ready(out["doc_vecs"])

    qn = jnp.linalg.norm(out["query_vecs"], axis=1)
    dn = jnp.linalg.norm(out["doc_vecs"], axis=1)
    assert out["query_vecs"].shape == (B, cfg["hidden"])
    assert out["doc_vecs"].shape == (B, cfg["hidden"])
    assert bool(jnp.all(jnp.abs(qn - 1.0) < 1e-3)) and bool(jnp.all(jnp.abs(dn - 1.0) < 1e-3))
    print("KERNEL_OK")
</pallas_src>

<mosaic_0001>
module attributes {stable_mosaic.version = 11 : i64} {
  func.func @_layernorm_add_kernel(%arg0: i32, %arg1: memref<16x32xf32, #tpu.memory_space<vmem>>, %arg2: memref<16x32xf32, #tpu.memory_space<vmem>>, %arg3: memref<1x32xf32, #tpu.memory_space<vmem>>, %arg4: memref<1x32xf32, #tpu.memory_space<vmem>>, %arg5: memref<16x32xf32, #tpu.memory_space<vmem>>) attributes {dimension_semantics = [#tpu.dimension_semantics<parallel>], iteration_bounds = array<i64: 1>, scalar_prefetch = 0 : i64, scratch_operands = 0 : i64, tpu.core_type = #tpu.core_type<tc>, window_params = [{transform_indices = @transform_0, window_bounds = array<i64: 16, 32>}, {transform_indices = @transform_1, window_bounds = array<i64: 16, 32>}, {pipeline_mode = #tpu.pipeline_mode<synchronous>, transform_indices = @transform_2, window_bounds = array<i64: 1, 32>}, {pipeline_mode = #tpu.pipeline_mode<synchronous>, transform_indices = @transform_3, window_bounds = array<i64: 1, 32>}, {transform_indices = @transform_4, window_bounds = array<i64: 16, 32>}]} {
    %c0 = arith.constant 0 : index
    %c0_0 = arith.constant 0 : index
    %0 = vector.load %arg1[%c0, %c0_0] : memref<16x32xf32, #tpu.memory_space<vmem>>, vector<16x32xf32>
    %c0_1 = arith.constant 0 : index
    %c0_2 = arith.constant 0 : index
    %1 = vector.load %arg2[%c0_1, %c0_2] : memref<16x32xf32, #tpu.memory_space<vmem>>, vector<16x32xf32>
    %2 = arith.addf %0, %1 : vector<16x32xf32>
    %cst = arith.constant dense<0.000000e+00> : vector<16xf32>
    %3 = vector.multi_reduction <add>, %2, %cst [1] : vector<16x32xf32> to vector<16xf32>
    %4 = vector.shape_cast %3 : vector<16xf32> to vector<16x1xf32>
    %cst_3 = arith.constant 3.200000e+01 : f32
    %5 = vector.broadcast %cst_3 : f32 to vector<16x1xf32>
    %6 = arith.divf %4, %5 : vector<16x1xf32>
    %7 = vector.broadcast %6 : vector<16x1xf32> to vector<16x32xf32>
    %8 = arith.subf %2, %7 : vector<16x32xf32>
    %9 = arith.mulf %8, %8 : vector<16x32xf32>
    %cst_4 = arith.constant dense<0.000000e+00> : vector<16xf32>
    %10 = vector.multi_reduction <add>, %9, %cst_4 [1] : vector<16x32xf32> to vector<16xf32>
    %11 = vector.shape_cast %10 : vector<16xf32> to vector<16x1xf32>
    %cst_5 = arith.constant 3.200000e+01 : f32
    %12 = vector.broadcast %cst_5 : f32 to vector<16x1xf32>
    %13 = arith.divf %11, %12 : vector<16x1xf32>
    %14 = vector.broadcast %6 : vector<16x1xf32> to vector<16x32xf32>
    %15 = arith.subf %2, %14 : vector<16x32xf32>
    %cst_6 = arith.constant 9.99999996E-13 : f32
    %16 = vector.broadcast %cst_6 : f32 to vector<16x1xf32>
    %17 = arith.addf %13, %16 : vector<16x1xf32>
    %18 = math.rsqrt %17 : vector<16x1xf32>
    %19 = vector.broadcast %18 : vector<16x1xf32> to vector<16x32xf32>
    %20 = arith.mulf %15, %19 : vector<16x32xf32>
    %c0_7 = arith.constant 0 : index
    %c0_8 = arith.constant 0 : index
    %21 = vector.load %arg3[%c0_7, %c0_8] : memref<1x32xf32, #tpu.memory_space<vmem>>, vector<1x32xf32>
    %22 = vector.broadcast %21 : vector<1x32xf32> to vector<16x32xf32>
    %23 = arith.mulf %20, %22 : vector<16x32xf32>
    %c0_9 = arith.constant 0 : index
    %c0_10 = arith.constant 0 : index
    %24 = vector.load %arg4[%c0_9, %c0_10] : memref<1x32xf32, #tpu.memory_space<vmem>>, vector<1x32xf32>
    %25 = vector.broadcast %24 : vector<1x32xf32> to vector<16x32xf32>
    %26 = arith.addf %23, %25 : vector<16x32xf32>
    %c0_11 = arith.constant 0 : index
    %c0_12 = arith.constant 0 : index
    %27 = vector.load %arg5[%c0_11, %c0_12] : memref<16x32xf32, #tpu.memory_space<vmem>>, vector<16x32xf32>
    tpu.vector_store %arg5[%c0_11, %c0_12], %26 {strides = array<i32>} : memref<16x32xf32, #tpu.memory_space<vmem>>, vector<16x32xf32>,
    return
  }
  func.func @transform_0(%arg0: i32) -> (i32, i32) {
    %c0_i32 = arith.constant 0 : i32
    %c0_i32_0 = arith.constant 0 : i32
    return %arg0, %c0_i32 : i32, i32
  }
  func.func @transform_1(%arg0: i32) -> (i32, i32) {
    %c0_i32 = arith.constant 0 : i32
    %c0_i32_0 = arith.constant 0 : i32
    return %arg0, %c0_i32 : i32, i32
  }
  func.func @transform_2(%arg0: i32) -> (i32, i32) {
    %c0_i32 = arith.constant 0 : i32
    %c0_i32_0 = arith.constant 0 : i32
    %c0_i32_1 = arith.constant 0 : i32
    return %c0_i32, %c0_i32_0 : i32, i32
  }
  func.func @transform_3(%arg0: i32) -> (i32, i32) {
    %c0_i32 = arith.constant 0 : i32
    %c0_i32_0 = arith.constant 0 : i32
    %c0_i32_1 = arith.constant 0 : i32
    return %c0_i32, %c0_i32_0 : i32, i32
  }
  func.func @transform_4(%arg0: i32) -> (i32, i32) {
    %c0_i32 = arith.constant 0 : i32
    %c0_i32_0 = arith.constant 0 : i32
    return %arg0, %c0_i32 : i32, i32
  }
}

</mosaic_0001>

<llo_original>
// kernel: tpu_custom_call.1
$region0: #{tpu_custom_call.1}
  #allocation0 [shape = 'u32[]', space=smem, size = 0x4, offset = 0x4, fixed_abs, tag = 'smem constant byte address 0x4 - core index']
  #allocation1 [shape = 'u32[144,128]{1,0:T(1,128)}', space=vmem, size = 0x12000, scoped, tag = 'internal scratch']
  %s0 = inlined_call_operand.hbm [shape: f32[16,32], index: 0, kind: input, shape index: {}]
  %s1 = inlined_call_operand.hbm [shape: f32[16,32], index: 1, kind: input, shape index: {}]
  %s2 = inlined_call_operand.vmem [shape: f32[1,32], index: 2, kind: input, shape index: {}]
  %s3 = inlined_call_operand.vmem [shape: f32[1,32], index: 3, kind: input, shape index: {}]
  %s4 = inlined_call_operand.hbm [shape: f32[16,32], index: 4, kind: output, shape index: {}]
  %s5 = sld [smem:[#allocation0]]
  $region34: #{tpu_custom_call.1} parent=0
    _
  %s7 = ssub.s32 1, %s5
  %s8 = scalar_select 0, %s7, %s5
  $region1: #{tpu_custom_call.1} parent=0
    #allocation2 [shape = 'u8[8192]{0}', space=vmem, size = 0x2000, scoped, tag = 'input window, operand 0, single buffered']
    #allocation3 [shape = 's32[1]{0}', space=sflag, size = 0x4, scoped, tag = 'scoped memory for tpu_custom_call.1']
    #allocation4 [shape = 's32[1]{0}', space=sflag, size = 0x4, scoped, tag = 'scoped memory for tpu_custom_call.1']
    #allocation5 [shape = 'u8[8192]{0}', space=vmem, size = 0x2000, scoped, tag = 'input window, operand 1, single buffered']
    #allocation6 [shape = 's32[1]{0}', space=sflag, size = 0x4, scoped, tag = 'scoped memory for tpu_custom_call.1']
    #allocation7 [shape = 'u8[8192]{0}', space=vmem, size = 0x2000, scoped, tag = 'output window, operand 0, single buffered']
    %9 = vsyncpa [#allocation3], 0
    %10 = vsyncpa [#allocation6], 0
    %11 = vsyncpa [#allocation4], 0
    // Predicated region
    $region2: #{tpu_custom_call.1} parent=1 // pred_check
      _
    $region3: #{tpu_custom_call.1} parent=1 // pred_check_branch
      %13 = sbr.rel (0) target = $region5
    $region4: #{tpu_custom_call.1} parent=1 // pred_region
      %s15 = ssub.s32 256, 256
      %16 = vsyncadd [#allocation3], %s15
      %s17 = sshll.u32 [#allocation2], 4
      %s18 = int_to_ptr.vmem [resolvable:$true] %s17
      %23 = dma.hbm_to_vmem [thread:$0]  %s0, 256, %s18, [#allocation3], 128, 128, 8
    $region5: #{tpu_custom_call.1} parent=1 // pred_fallthru
      _
    // Predicated region
    $region6: #{tpu_custom_call.1} parent=1 // pred_check
      _
    $region7: #{tpu_custom_call.1} parent=1 // pred_check_branch
      %25 = sbr.rel (0) target = $region9
    $region8: #{tpu_custom_call.1} parent=1 // pred_region
      %s27 = ssub.s32 256, 256
      %28 = vsyncadd [#allocation6], %s27
      %s29 = sshll.u32 [#allocation5], 4
      %s30 = int_to_ptr.vmem [resolvable:$true] %s29
      %35 = dma.hbm_to_vmem [thread:$0]  %s1, 256, %s30, [#allocation6], 128, 128, 8
    $region9: #{tpu_custom_call.1} parent=1 // pred_fallthru
      _
    // Predicated region
    $region10: #{tpu_custom_call.1} parent=1 // pred_check
      _
    $region11: #{tpu_custom_call.1} parent=1 // pred_check_branch
      %37 = sbr.rel (0) target = $region13
    $region12: #{tpu_custom_call.1} parent=1 // pred_region
      _
    $region13: #{tpu_custom_call.1} parent=1 // pred_fallthru
      _
    // Predicated region
    $region14: #{tpu_custom_call.1} parent=1 // pred_check
      _
    $region15: #{tpu_custom_call.1} parent=1 // pred_check_branch
      %39 = sbr.rel (0) target = $region17
    $region16: #{tpu_custom_call.1} parent=1 // pred_region
      _
    $region17: #{tpu_custom_call.1} parent=1 // pred_fallthru
      _
    // Predicated region
    $region18: #{tpu_custom_call.1} parent=1 // pred_check
      _
    $region19: #{tpu_custom_call.1} parent=1 // pred_check_branch
      %41 = sbr.rel (0) target = $region21
    $region20: #{tpu_custom_call.1} parent=1 // pred_region
      %42 = dma.done [#allocation3], 256
    $region21: #{tpu_custom_call.1} parent=1 // pred_fallthru
      _
    // Predicated region
    $region22: #{tpu_custom_call.1} parent=1 // pred_check
      _
    $region23: #{tpu_custom_call.1} parent=1 // pred_check_branch
      %44 = sbr.rel (0) target = $region25
    $region24: #{tpu_custom_call.1} parent=1 // pred_region
      %45 = dma.done [#allocation6], 256
    $region25: #{tpu_custom_call.1} parent=1 // pred_fallthru
      _
    %v46 = vld [vmem:[#allocation2] sm:$0xff]
    %v47 = vld [vmem:[#allocation2 + $0x8] sm:$0xff]
    %v48 = vld [vmem:[#allocation5] sm:$0xff]
    %v49 = vld [vmem:[#allocation5 + $0x8] sm:$0xff]
    %v50 = vadd.f32 %v46, %v48
    %v51 = vadd.f32 %v47, %v49
    %vm52 = vcmask 261120
    %v53 = vsel %vm52, %v50, 0.0
    %54 = vadd.xlane.f32.xlu0 %v53
    %v55 = vpop.xlane.xlu0 %54
    %v56 = vsel %vm52, %v51, 0.0
    %57 = vadd.xlane.f32.xlu0 %v56
    %v58 = vpop.xlane.xlu0 %57
    %v59 = vrcp.pop 32.0
    %v60 = vmul.f32 %v55, %v59
    %v61 = vmul.f32 %v58, %v59
    %v62 = vsub.f32 %v50, %v60
    %v63 = vsub.f32 %v51, %v61
    %v64 = vmul.f32 %v62, %v62
    %v65 = vmul.f32 %v63, %v63
    %v66 = vsel %vm52, %v64, 0.0
    %67 = vadd.xlane.f32.xlu0 %v66
    %v68 = vpop.xlane.xlu0 %67
    %v69 = vsel %vm52, %v65, 0.0
    %70 = vadd.xlane.f32.xlu0 %v69
    %v71 = vpop.xlane.xlu0 %70
    %v72 = vmul.f32 %v68, %v59
    %v73 = vmul.f32 %v71, %v59
    %v74 = vadd.f32 %v72, 1e-12
    %v75 = vadd.f32 %v73, 1e-12
    %v76 = vrsqrt.pop %v74
    %v77 = vrsqrt.pop %v75
    %v78 = vmul.f32 %v62, %v76
    %v79 = vmul.f32 %v63, %v77
    %v80 = vld [vmem:[%s2] sm:$0x1]
    %v82 = vlaneseq
    %v83 = vshrl.u32 %v82, 7
    %v84 = vsub.s32 0, %v83
    %v85 = vrot.slane %v80, %v84
    %v87 = vmul.f32 %v78, %v85
    %v88 = vmul.f32 %v79, %v85
    %v89 = vld [vmem:[%s3] sm:$0x1]
    %v91 = vlaneseq
    %v92 = vshrl.u32 %v91, 7
    %v93 = vsub.s32 0, %v92
    %v94 = vrot.slane %v89, %v93
    %v96 = vadd.f32 %v87, %v94
    %v97 = vadd.f32 %v88, %v94
    %98 = vst.msk [vmem:[#allocation7] sm:$0xff] %vm52, %v96
    %99 = vst.msk [vmem:[#allocation7 + $0x8] sm:$0xff] %vm52, %v97
    // Predicated region
    $region26: #{tpu_custom_call.1} parent=1 // pred_check
      _
    $region27: #{tpu_custom_call.1} parent=1 // pred_check_branch
      %101 = sbr.rel (0) target = $region29
    $region28: #{tpu_custom_call.1} parent=1 // pred_region
      %s103 = ssub.s32 256, 256
      %104 = vsyncadd [#allocation4], %s103
      %s105 = sshll.u32 [#allocation7], 4
      %s106 = int_to_ptr.vmem [resolvable:$true] %s105
      %111 = dma.vmem_to_hbm [thread:$0]  %s106, 256, %s4, [#allocation4], 128, 128, 8
    $region29: #{tpu_custom_call.1} parent=1 // pred_fallthru
      _
    // Predicated region
    $region30: #{tpu_custom_call.1} parent=1 // pred_check
      _
    $region31: #{tpu_custom_call.1} parent=1 // pred_check_branch
      %113 = sbr.rel (0) target = $region33
    $region32: #{tpu_custom_call.1} parent=1 // pred_region
      %114 = dma.done [#allocation4], 256
    $region33: #{tpu_custom_call.1} parent=1 // pred_fallthru
      _
    %115 = vsyncpa [#allocation3], 1
    %116 = vsyncpa [#allocation6], 1
    %117 = vsyncpa [#allocation4], 1

</llo_original>
